<compile_context>
chip_gen: v7x
topology: tpu7x:2x2x1
jax: 0.10.0
libtpu: 0.0.40
codegen_flags: <defaults>
</compile_context>

<pallas_src>
import functools

import jax
import jax.numpy as jnp
from jax.experimental import pallas as pl
from jax.experimental.pallas import tpu as pltpu


def _wdl_kernel(student_ref, teacher_ref, labels_ref, cw_ref, out_ref, *,
                temperature: float, alpha: float, int_temp_pow):
    s = student_ref[...].astype(jnp.float32)      # [TB, C] student logits
    t = teacher_ref[...].astype(jnp.float32)      # [TB, C] teacher logits
    labels = labels_ref[...]                      # [TB, 1] int32
    cw = cw_ref[...].astype(jnp.float32)          # [1,  C] class weights

    C = s.shape[1]
    inv_T = jnp.float32(1.0 / temperature)
    # alpha * T^2 / C folded into one constant (KL term uses .mean(dim=1)).
    coeff_kl = jnp.float32(alpha * temperature * temperature / C)
    coeff_ce = jnp.float32(1.0 - alpha)

    # ---- temperature-scaled logits (1/T multiplies, no divides) ----
    st = s * inv_T
    tt = t * inv_T

    # ---- teacher softmax(t/T) pieces, no [TB,C] divide ----
    t_max = jnp.max(tt, axis=1, keepdims=True)
    t_exp = jnp.exp(tt - t_max)
    t_sum = jnp.sum(t_exp, axis=1, keepdims=True)

    # ---- student log_softmax(s/T) denominator ----
    s_max = jnp.max(st, axis=1, keepdims=True)
    s_exp = jnp.exp(st - s_max)
    s_sum = jnp.sum(s_exp, axis=1, keepdims=True)

    # Folded per-row constant: log_softmax_t - log_softmax_s = (tt - st) + c
    c = (s_max + jnp.log(s_sum)) - (t_max + jnp.log(t_sum))      # [TB, 1]

    # KLDiv(reduction='none').mean(dim=1)
    #   = (1/C) * (1/t_sum) * sum_c t_exp * ((tt - st) + c)
    kl_row = jnp.sum(t_exp * ((tt - st) + c), axis=1, keepdims=True)
    distill = kl_row * pl.reciprocal(t_sum, approx=True)          # [TB, 1]

    # ---- CrossEntropy on unscaled student logits ----
    # max(s) = T * s_max and exp(s - max(s)) = s_exp ** T, so for integer T we
    # avoid a third full-tile exp and a second full-tile max reduce.
    if int_temp_pow is not None:
        f_exp = s_exp
        for _ in range(int_temp_pow - 1):
            f_exp = f_exp * s_exp
    else:
        f_exp = jnp.exp(s - temperature * s_max)
    f_sum = jnp.sum(f_exp, axis=1, keepdims=True)
    f_logz = temperature * s_max + jnp.log(f_sum)                 # [TB, 1] logsumexp(s)

    # Label gather fused into masked reduces (no [TB,C] log_probs tile).
    col = jax.lax.broadcasted_iota(jnp.int32, s.shape, 1)         # [TB, C]
    mask = col == labels                                          # one True per row
    s_label = jnp.sum(jnp.where(mask, s, 0.0), axis=1, keepdims=True)
    cw_label = jnp.sum(jnp.where(mask, cw, 0.0), axis=1, keepdims=True)
    weighted_ce = (f_logz - s_label) * cw_label                   # [TB, 1]

    # Per-sample total loss; batch mean happens in the wrapper.
    out_ref[...] = coeff_kl * distill + coeff_ce * weighted_ce    # [TB, 1]


def _vmem_capacity_bytes():
    """Physical VMEM of the local chip; conservative fallback if unavailable."""
    try:
        info = pltpu.get_tpu_info()
        cap = getattr(info, "vmem_capacity_bytes", None)
        if cap:
            return int(cap)
    except Exception:
        pass
    return 64 * 1024 * 1024   # v7x has the smallest VMEM (64 MiB); safe default


def _choose_block_rows(B, C, in_itemsize, budget_bytes):
    """Pick the batch-tile height TB.

    TB is set primarily by the VMEM budget (big tiles amortize the ~0.35us
    per-grid-step overhead on this HBM-bound kernel).  It is only reduced to
    create extra grid steps when each step would still move a few MiB of
    logits, which keeps the DMA pipeline overlapped and gives v7x's two
    TensorCores something to shard.
    """
    # ~10 live [TB, C] f32 temporaries + 2 inputs x 2 pipeline buffers.
    per_row_bytes = C * (10 * 4 + 4 * in_itemsize) + 16
    tb = max(budget_bytes // per_row_bytes, 8)

    logits_row_bytes = 2 * C * in_itemsize
    min_rows_for_split = max(8, (4 * 1024 * 1024) // max(logits_row_bytes, 1))
    for want_tiles in (8, 4, 2):
        rows = (B + want_tiles - 1) // want_tiles
        if rows >= min_rows_for_split:
            tb = min(tb, rows)
            break

    tb = min(tb, B)
    if B > 8:
        tb = max(8, (tb // 8) * 8)   # keep the sublane dim 8-aligned
    return int(max(tb, 1))


def weighted_distillation_loss(student_logits, teacher_logits, labels,
                               class_weights, temperature=2.0, alpha=0.5):
    B, C = student_logits.shape
    labels2d = labels.reshape(B, 1).astype(jnp.int32)
    cw2d = class_weights.reshape(1, C).astype(jnp.float32)

    in_itemsize = max(jnp.dtype(student_logits.dtype).itemsize,
                      jnp.dtype(teacher_logits.dtype).itemsize)

    vmem_cap = _vmem_capacity_bytes()
    temp_budget = int(0.35 * vmem_cap)            # ~22 MiB on v7x, ~45 MiB on v5e/v6e
    vmem_limit = int(min(0.6 * vmem_cap, vmem_cap - (8 << 20)))

    TB = _choose_block_rows(B, C, in_itemsize, temp_budget)
    num_tiles = pl.cdiv(B, TB)

    T = float(temperature)
    int_temp_pow = int(T) if (T.is_integer() and 1 <= int(T) <= 4) else None

    kernel = functools.partial(_wdl_kernel, temperature=T, alpha=float(alpha),
                               int_temp_pow=int_temp_pow)

    cost = pl.CostEstimate(
        flops=int(14 * B * C),
        transcendentals=int(3 * B * C),
        bytes_accessed=int(2 * B * C * in_itemsize + 8 * B + 4 * C),
    )

    per_sample = pl.pallas_call(
        kernel,
        out_shape=jax.ShapeDtypeStruct((B, 1), jnp.float32),
        grid=(num_tiles,),
        in_specs=[
            pl.BlockSpec((TB, C), lambda i: (i, 0)),   # student logits (native dtype)
            pl.BlockSpec((TB, C), lambda i: (i, 0)),   # teacher logits (native dtype)
            pl.BlockSpec((TB, 1), lambda i: (i, 0)),   # labels
            pl.BlockSpec((1, C), lambda i: (0, 0)),    # class weights (resident)
        ],
        out_specs=pl.BlockSpec((TB, 1), lambda i: (i, 0)),
        compiler_params=pltpu.CompilerParams(
            dimension_semantics=("parallel",),         # disjoint output blocks
            vmem_limit_bytes=vmem_limit),
        cost_estimate=cost,
    )(student_logits, teacher_logits, labels2d, cw2d)

    # Tiny final reduction in plain JAX (keeps the batch grid axis parallel).
    return jnp.mean(per_sample)


def build_class_weights(num_classes, drift_classes, label_mapping):
    """Deterministic re-implementation of the module __init__ weight setup."""
    focus_classes = {'Heartbleed', 'Infiltration', 'PortScan', 'SSH-Patator'}
    w = [1.0] * num_classes
    for class_name, idx in label_mapping.items():
        if class_name not in drift_classes:
            w[idx] = 1.5
        if class_name in focus_classes:
            w[idx] = 3.0
    return jnp.asarray(w, dtype=jnp.float32)


if __name__ == "__main__":
    # Small deterministic setup consistent with the module's forward.
    num_classes = 8
    batch = 8
    label_mapping = {
        'BENIGN': 0, 'DDoS': 1, 'PortScan': 2, 'Bot': 3,
        'Infiltration': 4, 'Heartbleed': 5, 'SSH-Patator': 6, 'FTP-Patator': 7,
    }
    drift_classes = ['DDoS', 'Bot']

    class_weights = build_class_weights(num_classes, drift_classes, label_mapping)

    key = jax.random.PRNGKey(0)
    k1, k2, k3 = jax.random.split(key, 3)
    student_logits = jax.random.normal(k1, (batch, num_classes), dtype=jnp.float32)
    teacher_logits = jax.random.normal(k2, (batch, num_classes), dtype=jnp.float32)
    labels = jax.random.randint(k3, (batch,), 0, num_classes, dtype=jnp.int32)

    loss = weighted_distillation_loss(student_logits, teacher_logits, labels,
                                      class_weights, temperature=2.0, alpha=0.5)
    jax.block_until_ready(loss)
    print("KERNEL_OK")
</pallas_src>

<mosaic_0001>
module attributes {stable_mosaic.version = 11 : i64} {
  func.func @_wdl_kernel(%arg0: i32, %arg1: memref<8x8xf32, #tpu.memory_space<vmem>>, %arg2: memref<8x8xf32, #tpu.memory_space<vmem>>, %arg3: memref<8x1xi32, #tpu.memory_space<vmem>>, %arg4: memref<1x8xf32, #tpu.memory_space<vmem>>, %arg5: memref<8x1xf32, #tpu.memory_space<vmem>>) attributes {dimension_semantics = [#tpu.dimension_semantics<parallel>], iteration_bounds = array<i64: 1>, scalar_prefetch = 0 : i64, scratch_operands = 0 : i64, tpu.core_type = #tpu.core_type<tc>, window_params = [{transform_indices = @transform_0, window_bounds = array<i64: 8, 8>}, {transform_indices = @transform_1, window_bounds = array<i64: 8, 8>}, {transform_indices = @transform_2, window_bounds = array<i64: 8, 1>}, {pipeline_mode = #tpu.pipeline_mode<synchronous>, transform_indices = @transform_3, window_bounds = array<i64: 1, 8>}, {transform_indices = @transform_4, window_bounds = array<i64: 8, 1>}]} {
    %c0 = arith.constant 0 : index
    %c0_0 = arith.constant 0 : index
    %0 = vector.load %arg1[%c0, %c0_0] : memref<8x8xf32, #tpu.memory_space<vmem>>, vector<8x8xf32>
    %c0_1 = arith.constant 0 : index
    %c0_2 = arith.constant 0 : index
    %1 = vector.load %arg2[%c0_1, %c0_2] : memref<8x8xf32, #tpu.memory_space<vmem>>, vector<8x8xf32>
    %c0_3 = arith.constant 0 : index
    %c0_4 = arith.constant 0 : index
    %2 = vector.load %arg3[%c0_3, %c0_4] : memref<8x1xi32, #tpu.memory_space<vmem>>, vector<8x1xi32>
    %c0_5 = arith.constant 0 : index
    %c0_6 = arith.constant 0 : index
    %3 = vector.load %arg4[%c0_5, %c0_6] : memref<1x8xf32, #tpu.memory_space<vmem>>, vector<1x8xf32>
    %cst = arith.constant 5.000000e-01 : f32
    %4 = vector.broadcast %cst : f32 to vector<8x8xf32>
    %5 = arith.mulf %0, %4 : vector<8x8xf32>
    %cst_7 = arith.constant 5.000000e-01 : f32
    %6 = vector.broadcast %cst_7 : f32 to vector<8x8xf32>
    %7 = arith.mulf %1, %6 : vector<8x8xf32>
    %cst_8 = arith.constant dense<0xFF800000> : vector<8xf32>
    %8 = vector.multi_reduction <maximumf>, %7, %cst_8 [1] : vector<8x8xf32> to vector<8xf32>
    %9 = vector.shape_cast %8 : vector<8xf32> to vector<8x1xf32>
    %10 = vector.broadcast %9 : vector<8x1xf32> to vector<8x8xf32>
    %11 = arith.subf %7, %10 : vector<8x8xf32>
    %12 = math.exp %11 : vector<8x8xf32>
    %cst_9 = arith.constant dense<0.000000e+00> : vector<8xf32>
    %13 = vector.multi_reduction <add>, %12, %cst_9 [1] : vector<8x8xf32> to vector<8xf32>
    %14 = vector.shape_cast %13 : vector<8xf32> to vector<8x1xf32>
    %cst_10 = arith.constant dense<0xFF800000> : vector<8xf32>
    %15 = vector.multi_reduction <maximumf>, %5, %cst_10 [1] : vector<8x8xf32> to vector<8xf32>
    %16 = vector.shape_cast %15 : vector<8xf32> to vector<8x1xf32>
    %17 = vector.broadcast %16 : vector<8x1xf32> to vector<8x8xf32>
    %18 = arith.subf %5, %17 : vector<8x8xf32>
    %19 = math.exp %18 : vector<8x8xf32>
    %cst_11 = arith.constant dense<0.000000e+00> : vector<8xf32>
    %20 = vector.multi_reduction <add>, %19, %cst_11 [1] : vector<8x8xf32> to vector<8xf32>
    %21 = vector.shape_cast %20 : vector<8xf32> to vector<8x1xf32>
    %22 = math.log %21 : vector<8x1xf32>
    %23 = arith.addf %16, %22 : vector<8x1xf32>
    %24 = math.log %14 : vector<8x1xf32>
    %25 = arith.addf %9, %24 : vector<8x1xf32>
    %26 = arith.subf %23, %25 : vector<8x1xf32>
    %27 = arith.subf %7, %5 : vector<8x8xf32>
    %28 = vector.broadcast %26 : vector<8x1xf32> to vector<8x8xf32>
    %29 = arith.addf %27, %28 : vector<8x8xf32>
    %30 = arith.mulf %12, %29 : vector<8x8xf32>
    %cst_12 = arith.constant dense<0.000000e+00> : vector<8xf32>
    %31 = vector.multi_reduction <add>, %30, %cst_12 [1] : vector<8x8xf32> to vector<8xf32>
    %32 = vector.shape_cast %31 : vector<8xf32> to vector<8x1xf32>
    %33 = tpu.reciprocal %14 {approx = true} : vector<8x1xf32> -> vector<8x1xf32>
    %34 = arith.mulf %32, %33 : vector<8x1xf32>
    %35 = arith.mulf %19, %19 : vector<8x8xf32>
    %cst_13 = arith.constant dense<0.000000e+00> : vector<8xf32>
    %36 = vector.multi_reduction <add>, %35, %cst_13 [1] : vector<8x8xf32> to vector<8xf32>
    %37 = vector.shape_cast %36 : vector<8xf32> to vector<8x1xf32>
    %cst_14 = arith.constant 2.000000e+00 : f32
    %38 = vector.broadcast %cst_14 : f32 to vector<8x1xf32>
    %39 = arith.mulf %38, %16 : vector<8x1xf32>
    %40 = math.log %37 : vector<8x1xf32>
    %41 = arith.addf %39, %40 : vector<8x1xf32>
    %42 = tpu.iota {dimensions = array<i32: 1>} : vector<8x8xi32>
    %43 = vector.broadcast %2 : vector<8x1xi32> to vector<8x8xi32>
    %44 = arith.cmpi eq, %42, %43 : vector<8x8xi32>
    %cst_15 = arith.constant 0.000000e+00 : f32
    %45 = vector.broadcast %cst_15 : f32 to vector<8x8xf32>
    %46 = arith.select %44, %0, %45 : vector<8x8xi1>, vector<8x8xf32>
    %cst_16 = arith.constant dense<0.000000e+00> : vector<8xf32>
    %47 = vector.multi_reduction <add>, %46, %cst_16 [1] : vector<8x8xf32> to vector<8xf32>
    %48 = vector.shape_cast %47 : vector<8xf32> to vector<8x1xf32>
    %cst_17 = arith.constant 0.000000e+00 : f32
    %49 = vector.shape_cast %3 : vector<1x8xf32> to vector<1x8xf32>
    %50 = vector.broadcast %49 : vector<1x8xf32> to vector<8x8xf32>
    %51 = vector.broadcast %cst_17 : f32 to vector<8x8xf32>
    %52 = arith.select %44, %50, %51 : vector<8x8xi1>, vector<8x8xf32>
    %cst_18 = arith.constant dense<0.000000e+00> : vector<8xf32>
    %53 = vector.multi_reduction <add>, %52, %cst_18 [1] : vector<8x8xf32> to vector<8xf32>
    %54 = vector.shape_cast %53 : vector<8xf32> to vector<8x1xf32>
    %55 = arith.subf %41, %48 : vector<8x1xf32>
    %56 = arith.mulf %55, %54 : vector<8x1xf32>
    %cst_19 = arith.constant 2.500000e-01 : f32
    %57 = vector.broadcast %cst_19 : f32 to vector<8x1xf32>
    %58 = arith.mulf %57, %34 : vector<8x1xf32>
    %cst_20 = arith.constant 5.000000e-01 : f32
    %59 = vector.broadcast %cst_20 : f32 to vector<8x1xf32>
    %60 = arith.mulf %59, %56 : vector<8x1xf32>
    %61 = arith.addf %58, %60 : vector<8x1xf32>
    %c0_21 = arith.constant 0 : index
    %c0_22 = arith.constant 0 : index
    %62 = vector.load %arg5[%c0_21, %c0_22] : memref<8x1xf32, #tpu.memory_space<vmem>>, vector<8x1xf32>
    tpu.vector_store %arg5[%c0_21, %c0_22], %61 {strides = array<i32>} : memref<8x1xf32, #tpu.memory_space<vmem>>, vector<8x1xf32>,
    return
  }
  func.func @transform_0(%arg0: i32) -> (i32, i32) {
    %c0_i32 = arith.constant 0 : i32
    %c0_i32_0 = arith.constant 0 : i32
    return %arg0, %c0_i32 : i32, i32
  }
  func.func @transform_1(%arg0: i32) -> (i32, i32) {
    %c0_i32 = arith.constant 0 : i32
    %c0_i32_0 = arith.constant 0 : i32
    return %arg0, %c0_i32 : i32, i32
  }
  func.func @transform_2(%arg0: i32) -> (i32, i32) {
    %c0_i32 = arith.constant 0 : i32
    %c0_i32_0 = arith.constant 0 : i32
    return %arg0, %c0_i32 : i32, i32
  }
  func.func @transform_3(%arg0: i32) -> (i32, i32) {
    %c0_i32 = arith.constant 0 : i32
    %c0_i32_0 = arith.constant 0 : i32
    %c0_i32_1 = arith.constant 0 : i32
    return %c0_i32, %c0_i32_0 : i32, i32
  }
  func.func @transform_4(%arg0: i32) -> (i32, i32) {
    %c0_i32 = arith.constant 0 : i32
    %c0_i32_0 = arith.constant 0 : i32
    return %arg0, %c0_i32 : i32, i32
  }
}

</mosaic_0001>

<llo_original>
// kernel: tpu_custom_call.1
$region0: #{tpu_custom_call.1}
  #allocation0 [shape = 'u32[]', space=smem, size = 0x4, offset = 0x4, fixed_abs, tag = 'smem constant byte address 0x4 - core index']
  #allocation1 [shape = 'u32[144,128]{1,0:T(1,128)}', space=vmem, size = 0x12000, scoped, tag = 'internal scratch']
  %s0 = inlined_call_operand.vmem [shape: f32[8,8], index: 0, kind: input, shape index: {}]
  %s1 = inlined_call_operand.hbm [shape: f32[8,8], index: 1, kind: input, shape index: {}]
  %s2 = inlined_call_operand.vmem [shape: s32[8,1], index: 2, kind: input, shape index: {}]
  %s3 = inlined_call_operand.vmem [shape: f32[1,8], index: 3, kind: input, shape index: {}]
  %s4 = inlined_call_operand.vmem [shape: f32[8,1], index: 4, kind: output, shape index: {}]
  %s5 = sld [smem:[#allocation0]]
  $region30: #{tpu_custom_call.1} parent=0
    _
  %s7 = ssub.s32 1, %s5
  %s8 = scalar_select 0, %s7, %s5
  $region1: #{tpu_custom_call.1} parent=0
    #allocation2 [shape = 'u8[4096]{0}', space=vmem, size = 0x1000, scoped, tag = 'input window, operand 1, single buffered']
    #allocation3 [shape = 's32[1]{0}', space=sflag, size = 0x4, scoped, tag = 'scoped memory for tpu_custom_call.1']
    %9 = vsyncpa [#allocation3], 0
    // Predicated region
    $region2: #{tpu_custom_call.1} parent=1 // pred_check
      _
    $region3: #{tpu_custom_call.1} parent=1 // pred_check_branch
      %11 = sbr.rel (0) target = $region5
    $region4: #{tpu_custom_call.1} parent=1 // pred_region
      _
    $region5: #{tpu_custom_call.1} parent=1 // pred_fallthru
      _
    // Predicated region
    $region6: #{tpu_custom_call.1} parent=1 // pred_check
      _
    $region7: #{tpu_custom_call.1} parent=1 // pred_check_branch
      %13 = sbr.rel (0) target = $region9
    $region8: #{tpu_custom_call.1} parent=1 // pred_region
      %s15 = ssub.s32 128, 128
      %16 = vsyncadd [#allocation3], %s15
      %s18 = sshll.u32 [#allocation2], 4
      %s19 = int_to_ptr.vmem [resolvable:$true] %s18
      %21 = dma.hbm_to_vmem [thread:$0]  %s1, 128, %s19, [#allocation3]
    $region9: #{tpu_custom_call.1} parent=1 // pred_fallthru
      _
    // Predicated region
    $region10: #{tpu_custom_call.1} parent=1 // pred_check
      _
    $region11: #{tpu_custom_call.1} parent=1 // pred_check_branch
      %23 = sbr.rel (0) target = $region13
    $region12: #{tpu_custom_call.1} parent=1 // pred_region
      _
    $region13: #{tpu_custom_call.1} parent=1 // pred_fallthru
      _
    // Predicated region
    $region14: #{tpu_custom_call.1} parent=1 // pred_check
      _
    $region15: #{tpu_custom_call.1} parent=1 // pred_check_branch
      %25 = sbr.rel (0) target = $region17
    $region16: #{tpu_custom_call.1} parent=1 // pred_region
      _
    $region17: #{tpu_custom_call.1} parent=1 // pred_fallthru
      _
    // Predicated region
    $region18: #{tpu_custom_call.1} parent=1 // pred_check
      _
    $region19: #{tpu_custom_call.1} parent=1 // pred_check_branch
      %27 = sbr.rel (0) target = $region21
    $region20: #{tpu_custom_call.1} parent=1 // pred_region
      %28 = dma.done [#allocation3], 128
    $region21: #{tpu_custom_call.1} parent=1 // pred_fallthru
      _
    %v29 = vld [vmem:[%s0] sm:$0xff]
    %v30 = vld [vmem:[#allocation2] sm:$0xff]
    %v31 = vld [vmem:[%s2] sm:$0xff]
    %v32 = vld [vmem:[%s3] sm:$0x1]
    %v33 = vmul.f32 %v29, 0.5
    %v34 = vmul.f32 %v30, 0.5
    %vm35 = vcmask 64512
    %v36 = vsel %vm35, %v34, -inf
    %37 = vmax.xlane.f32.xlu0 %v36
    %v38 = vpop.xlane.xlu0 %37
    %v39 = vsub.f32 %v34, %v38
    %v40 = vmul.f32 %v39, 1.442695
    %v41 = vpow.pop %v40
    %v42 = vsel %vm35, %v41, 0.0
    %43 = vadd.xlane.f32.xlu0 %v42
    %v44 = vpop.xlane.xlu0 %43
    %v45 = vsel %vm35, %v33, -inf
    %46 = vmax.xlane.f32.xlu0 %v45
    %v47 = vpop.xlane.xlu0 %46
    %v48 = vsub.f32 %v33, %v47
    %v49 = vmul.f32 %v48, 1.442695
    %v50 = vpow.pop %v49
    %v51 = vsel %vm35, %v50, 0.0
    %52 = vadd.xlane.f32.xlu0 %v51
    %v53 = vpop.xlane.xlu0 %52
    %v54 = vlog2.pop %v53
    %v55 = vmul.f32 %v54, 0.6931472
    %v56 = vadd.f32 %v47, %v55
    %v57 = vlog2.pop %v44
    %v58 = vmul.f32 %v57, 0.6931472
    %v59 = vadd.f32 %v38, %v58
    %v60 = vsub.f32 %v56, %v59
    %v61 = vsub.f32 %v34, %v33
    %v62 = vadd.f32 %v61, %v60
    %v63 = vmul.f32 %v41, %v62
    %v64 = vsel %vm35, %v63, 0.0
    %65 = vadd.xlane.f32.xlu0 %v64
    %v66 = vpop.xlane.xlu0 %65
    %v67 = vrcp.pop %v44
    %v68 = vmul.f32 %v66, %v67
    %v69 = vmul.f32 %v50, %v50
    %v70 = vsel %vm35, %v69, 0.0
    %71 = vadd.xlane.f32.xlu0 %v70
    %v72 = vpop.xlane.xlu0 %71
    %v73 = vmul.f32 %v47, 2.0
    %v74 = vlog2.pop %v72
    %v75 = vmul.f32 %v74, 0.6931472
    %v76 = vadd.f32 %v73, %v75
    %v77 = vlaneseq
    %v78 = vand.u32 %v77, 127
    %79 = vset.pattern.permute.xlu0 0
    %80 = vperm.xlu0 %79, %v31
    %v81 = vpop.permute.xlu0 %80
    %vm82 = vcmp.eq.s32.totalorder %v78, %v81
    %v83 = vsel %vm82, %v29, 0.0
    %v84 = vsel %vm35, %v83, 0.0
    %85 = vadd.xlane.f32.xlu0 %v84
    %v86 = vpop.xlane.xlu0 %85
    %v88 = vlaneseq
    %v89 = vshrl.u32 %v88, 7
    %v90 = vsub.s32 0, %v89
    %v91 = vrot.slane %v32, %v90
    %v93 = vsel %vm82, %v91, 0.0
    %v94 = vsel %vm35, %v93, 0.0
    %95 = vadd.xlane.f32.xlu0 %v94
    %v96 = vpop.xlane.xlu0 %95
    %v97 = vsub.f32 %v76, %v86
    %v98 = vmul.f32 %v97, %v96
    %v99 = vmul.f32 %v68, 0.25
    %v100 = vmul.f32 %v98, 0.5
    %v101 = vadd.f32 %v99, %v100
    %vm102 = vcmask 7168
    %103 = vst.msk [vmem:[%s4] sm:$0xff] %vm102, %v101
    // Predicated region
    $region22: #{tpu_custom_call.1} parent=1 // pred_check
      _
    $region23: #{tpu_custom_call.1} parent=1 // pred_check_branch
      %105 = sbr.rel (0) target = $region25
    $region24: #{tpu_custom_call.1} parent=1 // pred_region
      _
    $region25: #{tpu_custom_call.1} parent=1 // pred_fallthru
      _
    // Predicated region
    $region26: #{tpu_custom_call.1} parent=1 // pred_check
      _
    $region27: #{tpu_custom_call.1} parent=1 // pred_check_branch
      %107 = sbr.rel (0) target = $region29
    $region28: #{tpu_custom_call.1} parent=1 // pred_region
      _
    $region29: #{tpu_custom_call.1} parent=1 // pred_fallthru
      _
    %108 = vsyncpa [#allocation3], 1

</llo_original>
